<compile_context>
chip_gen: v7x
topology: tpu7x:2x2x1
jax: 0.10.0
libtpu: 0.0.40
codegen_flags: <defaults>
</compile_context>

<pallas_src>
import functools

import jax
import jax.numpy as jnp
from jax.experimental import pallas as pl
from jax.experimental.pallas import tpu as pltpu


# ---------------------------------------------------------------------------
# Kernel
# ---------------------------------------------------------------------------
def _ffn_kernel(x_ref, w1_ref, b1_ref, w2_ref, b2_ref, o_ref, acc_ref,
                *, compute_dtype):
    """out_tile = relu(x_tile @ w1 + b1) @ w2 + b2, accumulated over d_ff chunks."""
    k = pl.program_id(1)
    nk = pl.num_programs(1)

    @pl.when(k == 0)
    def _init():
        # Fold the second bias into the accumulator init: added once per M tile,
        # not once per d_ff chunk.
        acc_ref[...] = jnp.broadcast_to(
            b2_ref[...].astype(jnp.float32), acc_ref.shape)

    x = x_ref[...].astype(compute_dtype)                     # [TM, d_model]
    w1 = w1_ref[...].astype(compute_dtype)                   # [d_model, TK]
    h = jnp.dot(x, w1, preferred_element_type=jnp.float32)   # f32 accumulate
    h = h + b1_ref[...].astype(jnp.float32)                  # [TM, TK]
    h = jnp.maximum(h, 0.0)                                  # ReLU
    # Dropout(p=0.1) in eval mode is the identity.
    # TODO(synk): training-mode dropout would need pltpu.prng_seed /
    # pltpu.prng_random_bits masking + 1/(1-p) rescale; omitted for eval parity.
    # TODO(synk): fp8 weight storage (per-channel scales applied to the f32
    # accumulator) would halve weight DMA and ~2x MXU rate on v7x; needs a
    # numerics sign-off.
    acc_ref[...] += jnp.dot(h.astype(compute_dtype),
                            w2_ref[...].astype(compute_dtype),
                            preferred_element_type=jnp.float32)

    @pl.when(k == nk - 1)
    def _writeback():
        o_ref[...] = acc_ref[...].astype(o_ref.dtype)


# ---------------------------------------------------------------------------
# Tile / VMEM planning
# ---------------------------------------------------------------------------
def _round_up(v, m):
    return ((v + m - 1) // m) * m


def _vmem_capacity_bytes():
    """Per-core VMEM capacity; conservative fallback if the query fails."""
    try:
        cap = int(pltpu.get_tpu_info().vmem_capacity_bytes)
        if cap > 0:
            return cap
    except Exception:
        pass
    try:
        kind = jax.devices()[0].device_kind.lower()
        if "v7" in kind:
            return 64 * 1024 * 1024
        return 128 * 1024 * 1024
    except Exception:
        return 64 * 1024 * 1024


def _is_multi_core_chip():
    """True on chips with >1 TensorCore sharing the grid (v7x)."""
    try:
        return "v7" in jax.devices()[0].device_kind.lower()
    except Exception:
        return False


def _vmem_estimate(tm, tk, d_model, in_isz, out_isz, comp_isz):
    """Explicit + compiler-materialized VMEM footprint of one grid step."""
    est = 2 * tm * d_model * in_isz          # x tile (double-buffered)
    est += 2 * tm * d_model * out_isz        # out tile (double-buffered)
    est += 2 * d_model * tk * in_isz         # w1 slab (double-buffered)
    est += 2 * tk * d_model * in_isz         # w2 slab (double-buffered)
    est += tm * d_model * 4                  # f32 accumulator scratch
    est += tm * tk * 4                       # f32 intermediate h
    est += tm * tk * comp_isz                # cast copy of h fed to 2nd matmul
    est += tm * d_model * 4                  # 2nd-matmul f32 result before +=
    est += 4 * 8 * (tk + d_model) * 4        # biases incl. (8,128) padding
    return est


def _select_tiles(m, d_model, d_ff_p, in_isz, out_isz, comp_isz,
                  tile_budget, want_two_m_tiles):
    """VMEM-budget-aware (tm, tk): shrink tk first, then tm, until it fits."""
    m8 = max(_round_up(m, 8), 8)
    tm_cands = sorted(
        {t for t in (1024, 512, 256, 128, 64, 32, 16, 8) if t <= m8}
        | ({m8} if m8 <= 1024 else set()),
        reverse=True)

    if d_ff_p % 128 != 0:                    # tiny d_ff (< 128): one full chunk
        tk_cands = [d_ff_p]
    else:
        tk_cands = [t for t in (2048, 1024, 512, 256, 128)
                    if t <= d_ff_p and d_ff_p % t == 0] or [d_ff_p]

    tm, tk = tm_cands[-1], tk_cands[-1]      # fallback: smallest tiles
    found = False
    for cand_tm in tm_cands:                 # biggest tm first ...
        for cand_tk in tk_cands:             # ... shrink tk first, then tm
            if _vmem_estimate(cand_tm, cand_tk, d_model,
                              in_isz, out_isz, comp_isz) <= tile_budget:
                tm, tk = cand_tm, cand_tk
                found = True
                break
        if found:
            break

    # Megacore (v7x has 2 TensorCores): make the "parallel" M axis >= 2
    # programs so both cores get balanced work.  Skipped on 1-TC parts, where
    # fewer M tiles means weights are streamed from HBM fewer times.
    if want_two_m_tiles and m > 8 and -(-m // tm) < 2:
        tm = max(_round_up(-(-m // 2), 8), 8)
    return tm, tk


# ---------------------------------------------------------------------------
# Wrapper
# ---------------------------------------------------------------------------
@functools.partial(jax.jit, static_argnames=("use_bf16_compute",))
def feed_forward(x, w1, b1, w2, b2, *, use_bf16_compute=False):
    """FeedForward: linear1 -> relu -> dropout(eval) -> linear2.

    x: [batch, seq, d_model] -> [batch, seq, d_model].
    Weights are [in_features, out_features] (transposed vs. nn.Linear).
    use_bf16_compute=True casts both matmul operands to bf16 (f32 accumulate)
    for 2-4x MXU throughput; default False for accuracy parity with f32.
    """
    batch, seq, d_model = x.shape
    d_ff = w1.shape[1]
    m = batch * seq
    x2d = x.reshape(m, d_model)

    # Zero-pad d_ff to a lane multiple when needed (>=128 and not 128-aligned).
    # Exact: relu(x @ 0 + 0) = 0 contributes nothing through the zero w2 rows.
    if d_ff >= 128 and d_ff % 128 != 0:
        d_ff_p = _round_up(d_ff, 128)
        pad = d_ff_p - d_ff
        w1 = jnp.pad(w1, ((0, 0), (0, pad)))
        b1 = jnp.pad(b1, ((0, 0), (0, pad)))
        w2 = jnp.pad(w2, ((0, pad), (0, 0)))
    else:
        d_ff_p = d_ff

    compute_dtype = jnp.bfloat16 if use_bf16_compute else x.dtype
    in_isz = jnp.dtype(x.dtype).itemsize
    out_isz = in_isz
    comp_isz = jnp.dtype(compute_dtype).itemsize

    cap = _vmem_capacity_bytes()
    tile_budget = int(cap * 0.70)            # explicit tiles; rest for compiler scratch
    tm, tk = _select_tiles(m, d_model, d_ff_p, in_isz, out_isz, comp_isz,
                           tile_budget, want_two_m_tiles=_is_multi_core_chip())

    n_m = -(-m // tm)                        # ragged last M block handled by Pallas
    grid = (n_m, d_ff_p // tk)

    est = _vmem_estimate(tm, tk, d_model, in_isz, out_isz, comp_isz)
    # Per-generation ceiling: ~52 MiB on 64 MiB (v7x), ~105 MiB on 128 MiB parts.
    vmem_limit = int(min(max(est * 3 // 2, 32 * 1024 * 1024), cap * 82 // 100))

    flops = 4 * m * d_model * d_ff           # two matmuls, 2*M*K*N each
    bytes_accessed = int(
        in_isz * m * d_model                 # x in
        + out_isz * m * d_model              # out
        + n_m * in_isz * 2 * d_model * d_ff_p  # w1 + w2, re-streamed per M tile
        + in_isz * (d_ff_p + d_model))       # biases

    out2d = pl.pallas_call(
        functools.partial(_ffn_kernel, compute_dtype=compute_dtype),
        out_shape=jax.ShapeDtypeStruct((m, d_model), x.dtype),
        grid=grid,
        in_specs=[
            pl.BlockSpec((tm, d_model), lambda i, k: (i, 0)),   # x tile
            pl.BlockSpec((d_model, tk), lambda i, k: (0, k)),   # w1 chunk
            pl.BlockSpec((1, tk), lambda i, k: (0, k)),         # b1 chunk
            pl.BlockSpec((tk, d_model), lambda i, k: (k, 0)),   # w2 chunk
            pl.BlockSpec((1, d_model), lambda i, k: (0, 0)),    # b2 (resident)
        ],
        out_specs=pl.BlockSpec((tm, d_model), lambda i, k: (i, 0)),
        scratch_shapes=[pltpu.VMEM((tm, d_model), jnp.float32)],
        compiler_params=pltpu.CompilerParams(
            dimension_semantics=("parallel", "arbitrary"),
            vmem_limit_bytes=vmem_limit),
        cost_estimate=pl.CostEstimate(
            flops=flops, transcendentals=0, bytes_accessed=bytes_accessed),
    )(x2d, w1, b1, w2, b2)

    return out2d.reshape(batch, seq, d_model)


# ---------------------------------------------------------------------------
# Params / reference / tests
# ---------------------------------------------------------------------------
def init_params(key, d_model, d_ff, dtype=jnp.float32):
    """Deterministic init mimicking nn.Linear's uniform(-1/sqrt(fan_in), +)."""
    k1, k2, k3, k4 = jax.random.split(key, 4)
    bound1 = 1.0 / (d_model ** 0.5)
    bound2 = 1.0 / (d_ff ** 0.5)
    w1 = jax.random.uniform(k1, (d_model, d_ff), dtype, -bound1, bound1)
    b1 = jax.random.uniform(k2, (1, d_ff), dtype, -bound1, bound1)
    w2 = jax.random.uniform(k3, (d_ff, d_model), dtype, -bound2, bound2)
    b2 = jax.random.uniform(k4, (1, d_model), dtype, -bound2, bound2)
    return w1, b1, w2, b2


def _reference(x, w1, b1, w2, b2):
    d_model = x.shape[-1]
    h = jnp.maximum(x.reshape(-1, d_model) @ w1 + b1, 0.0)
    return (h @ w2 + b2).reshape(x.shape)


if __name__ == "__main__":
    key = jax.random.PRNGKey(0)

    def check(d_model, d_ff, batch, seq, key, tol):
        kx, kp, key = jax.random.split(key, 3)
        x = jax.random.normal(kx, (batch, seq, d_model), jnp.float32)
        w1, b1, w2, b2 = init_params(kp, d_model, d_ff)
        out = feed_forward(x, w1, b1, w2, b2)
        jax.block_until_ready(out)
        ref = _reference(x, w1, b1, w2, b2)
        assert out.shape == x.shape
        err = float(jnp.max(jnp.abs(out - ref)))
        assert jnp.allclose(out, ref, atol=tol, rtol=tol), f"max abs err = {err}"
        return key

    # Case 1: toy module-spec shape (single k chunk; d_model/d_ff < 128 => full-dim blocks).
    key = check(32, 64, 2, 8, key, 1e-4)
    # Case 2: d_ff-chunk accumulation (grid k = 3) + ragged M block (m = 300).
    key = check(128, 384, 3, 100, key, 1e-4)
    # Case 3: d_ff not a multiple of 128 -> exercises the exact zero-pad weight path.
    key = check(128, 200, 2, 24, key, 1e-4)

    print("KERNEL_OK")
</pallas_src>

<mosaic_0001>
module attributes {stable_mosaic.version = 11 : i64} {
  func.func @_ffn_kernel(%arg0: i32, %arg1: i32, %arg2: memref<16x32xf32, #tpu.memory_space<vmem>>, %arg3: memref<32x64xf32, #tpu.memory_space<vmem>>, %arg4: memref<1x64xf32, #tpu.memory_space<vmem>>, %arg5: memref<64x32xf32, #tpu.memory_space<vmem>>, %arg6: memref<1x32xf32, #tpu.memory_space<vmem>>, %arg7: memref<16x32xf32, #tpu.memory_space<vmem>>, %arg8: memref<16x32xf32, #tpu.memory_space<vmem>>) attributes {dimension_semantics = [#tpu.dimension_semantics<parallel>, #tpu.dimension_semantics<arbitrary>], iteration_bounds = array<i64: 1, 1>, scalar_prefetch = 0 : i64, scratch_operands = 1 : i64, tpu.core_type = #tpu.core_type<tc>, window_params = [{transform_indices = @transform_0, window_bounds = array<i64: 16, 32>}, {transform_indices = @transform_1, window_bounds = array<i64: 32, 64>}, {transform_indices = @transform_2, window_bounds = array<i64: 1, 64>}, {transform_indices = @transform_3, window_bounds = array<i64: 64, 32>}, {pipeline_mode = #tpu.pipeline_mode<synchronous>, transform_indices = @transform_4, window_bounds = array<i64: 1, 32>}, {transform_indices = @transform_5, window_bounds = array<i64: 16, 32>}]} {
    %c0_i32 = arith.constant 0 : i32
    %0 = arith.cmpi eq, %arg1, %c0_i32 : i32
    %1 = arith.extui %0 : i1 to i32
    %c0_i32_0 = arith.constant 0 : i32
    %2 = arith.cmpi ne, %1, %c0_i32_0 : i32
    scf.if %2 {
      %c0_16 = arith.constant 0 : index
      %c0_17 = arith.constant 0 : index
      %19 = vector.load %arg6[%c0_16, %c0_17] : memref<1x32xf32, #tpu.memory_space<vmem>>, vector<1x32xf32>
      %20 = vector.shape_cast %19 : vector<1x32xf32> to vector<1x32xf32>
      %21 = vector.broadcast %20 : vector<1x32xf32> to vector<16x32xf32>
      %c0_18 = arith.constant 0 : index
      %c0_19 = arith.constant 0 : index
      %22 = vector.load %arg8[%c0_18, %c0_19] : memref<16x32xf32, #tpu.memory_space<vmem>>, vector<16x32xf32>
      tpu.vector_store %arg8[%c0_18, %c0_19], %21 {strides = array<i32>} : memref<16x32xf32, #tpu.memory_space<vmem>>, vector<16x32xf32>,
    } else {
    }
    %c0 = arith.constant 0 : index
    %c0_1 = arith.constant 0 : index
    %3 = vector.load %arg2[%c0, %c0_1] : memref<16x32xf32, #tpu.memory_space<vmem>>, vector<16x32xf32>
    %c0_2 = arith.constant 0 : index
    %c0_3 = arith.constant 0 : index
    %4 = vector.load %arg3[%c0_2, %c0_3] : memref<32x64xf32, #tpu.memory_space<vmem>>, vector<32x64xf32>
    %cst = arith.constant dense<0.000000e+00> : vector<16x64xf32>
    %5 = tpu.matmul %3, %4, %cst {dimension_numbers = #tpu.dot_dimension_numbers<[1], [0], [0], [1], [0, 0, 1, 1], [], []>} : vector<16x32xf32>, vector<32x64xf32>, vector<16x64xf32> -> vector<16x64xf32>
    %c0_4 = arith.constant 0 : index
    %c0_5 = arith.constant 0 : index
    %6 = vector.load %arg4[%c0_4, %c0_5] : memref<1x64xf32, #tpu.memory_space<vmem>>, vector<1x64xf32>
    %7 = vector.broadcast %6 : vector<1x64xf32> to vector<16x64xf32>
    %8 = arith.addf %5, %7 : vector<16x64xf32>
    %cst_6 = arith.constant 0.000000e+00 : f32
    %9 = vector.broadcast %cst_6 : f32 to vector<16x64xf32>
    %10 = arith.maximumf %8, %9 : vector<16x64xf32>
    %c0_7 = arith.constant 0 : index
    %c0_8 = arith.constant 0 : index
    %11 = vector.load %arg8[%c0_7, %c0_8] : memref<16x32xf32, #tpu.memory_space<vmem>>, vector<16x32xf32>
    %c0_9 = arith.constant 0 : index
    %c0_10 = arith.constant 0 : index
    %12 = vector.load %arg5[%c0_9, %c0_10] : memref<64x32xf32, #tpu.memory_space<vmem>>, vector<64x32xf32>
    %cst_11 = arith.constant dense<0.000000e+00> : vector<16x32xf32>
    %13 = tpu.matmul %10, %12, %cst_11 {dimension_numbers = #tpu.dot_dimension_numbers<[1], [0], [0], [1], [0, 0, 1, 1], [], []>} : vector<16x64xf32>, vector<64x32xf32>, vector<16x32xf32> -> vector<16x32xf32>
    %14 = arith.addf %11, %13 : vector<16x32xf32>
    %c0_12 = arith.constant 0 : index
    %c0_13 = arith.constant 0 : index
    %15 = vector.load %arg8[%c0_12, %c0_13] : memref<16x32xf32, #tpu.memory_space<vmem>>, vector<16x32xf32>
    tpu.vector_store %arg8[%c0_12, %c0_13], %14 {strides = array<i32>} : memref<16x32xf32, #tpu.memory_space<vmem>>, vector<16x32xf32>,
    %c0_i32_14 = arith.constant 0 : i32
    %16 = arith.cmpi eq, %arg1, %c0_i32_14 : i32
    %17 = arith.extui %16 : i1 to i32
    %c0_i32_15 = arith.constant 0 : i32
    %18 = arith.cmpi ne, %17, %c0_i32_15 : i32
    scf.if %18 {
      %c0_16 = arith.constant 0 : index
      %c0_17 = arith.constant 0 : index
      %19 = vector.load %arg8[%c0_16, %c0_17] : memref<16x32xf32, #tpu.memory_space<vmem>>, vector<16x32xf32>
      %c0_18 = arith.constant 0 : index
      %c0_19 = arith.constant 0 : index
      %20 = vector.load %arg7[%c0_18, %c0_19] : memref<16x32xf32, #tpu.memory_space<vmem>>, vector<16x32xf32>
      tpu.vector_store %arg7[%c0_18, %c0_19], %19 {strides = array<i32>} : memref<16x32xf32, #tpu.memory_space<vmem>>, vector<16x32xf32>,
    } else {
    }
    return
  }
  func.func @transform_0(%arg0: i32, %arg1: i32) -> (i32, i32) {
    %c0_i32 = arith.constant 0 : i32
    %c0_i32_0 = arith.constant 0 : i32
    return %arg0, %c0_i32 : i32, i32
  }
  func.func @transform_1(%arg0: i32, %arg1: i32) -> (i32, i32) {
    %c0_i32 = arith.constant 0 : i32
    %c0_i32_0 = arith.constant 0 : i32
    return %c0_i32, %arg1 : i32, i32
  }
  func.func @transform_2(%arg0: i32, %arg1: i32) -> (i32, i32) {
    %c0_i32 = arith.constant 0 : i32
    %c0_i32_0 = arith.constant 0 : i32
    return %c0_i32, %arg1 : i32, i32
  }
  func.func @transform_3(%arg0: i32, %arg1: i32) -> (i32, i32) {
    %c0_i32 = arith.constant 0 : i32
    %c0_i32_0 = arith.constant 0 : i32
    return %arg1, %c0_i32 : i32, i32
  }
  func.func @transform_4(%arg0: i32, %arg1: i32) -> (i32, i32) {
    %c0_i32 = arith.constant 0 : i32
    %c0_i32_0 = arith.constant 0 : i32
    %c0_i32_1 = arith.constant 0 : i32
    return %c0_i32, %c0_i32_0 : i32, i32
  }
  func.func @transform_5(%arg0: i32, %arg1: i32) -> (i32, i32) {
    %c0_i32 = arith.constant 0 : i32
    %c0_i32_0 = arith.constant 0 : i32
    return %arg0, %c0_i32 : i32, i32
  }
}

</mosaic_0001>

<llo_original>
// kernel: feed_forward.1
$region0: #{feed_forward.1}
  #allocation0 [shape = 'u32[]', space=smem, size = 0x4, offset = 0x4, fixed_abs, tag = 'smem constant byte address 0x4 - core index']
  #allocation1 [shape = 'u32[144,128]{1,0:T(1,128)}', space=vmem, size = 0x12000, scoped, tag = 'internal scratch']
  #allocation2 [shape = 'f32[16,32]{1,0:T(8,128)}', space=vmem, size = 0x2000, scoped, tag = 'scratch operand']
  %s0 = inlined_call_operand.vmem [shape: f32[16,32], index: 0, kind: input, shape index: {}]
  %s1 = inlined_call_operand.vmem [shape: f32[32,64], index: 1, kind: input, shape index: {}]
  %s2 = inlined_call_operand.vmem [shape: f32[1,64], index: 2, kind: input, shape index: {}]
  %s3 = inlined_call_operand.vmem [shape: f32[64,32], index: 3, kind: input, shape index: {}]
  %s4 = inlined_call_operand.vmem [shape: f32[1,32], index: 4, kind: input, shape index: {}]
  %s5 = inlined_call_operand.hbm [shape: f32[16,32], index: 5, kind: output, shape index: {}]
  %s6 = sld [smem:[#allocation0]]
  $region38: #{feed_forward.1} parent=0
    _
  %s8 = ssub.s32 1, %s6
  %s9 = scalar_select 0, %s8, %s6
  $region1: #{feed_forward.1} parent=0
    #allocation3 [shape = 'u8[8192]{0}', space=vmem, size = 0x2000, scoped, tag = 'output window, operand 0, single buffered']
    #allocation4 [shape = 's32[1]{0}', space=sflag, size = 0x4, scoped, tag = 'scoped memory for feed_forward.1']
    %10 = vsyncpa [#allocation4], 0
    // Predicated region
    $region2: #{feed_forward.1} parent=1 // pred_check
      _
    $region3: #{feed_forward.1} parent=1 // pred_check_branch
      %12 = sbr.rel (0) target = $region5
    $region4: #{feed_forward.1} parent=1 // pred_region
      _
    $region5: #{feed_forward.1} parent=1 // pred_fallthru
      _
    // Predicated region
    $region6: #{feed_forward.1} parent=1 // pred_check
      _
    $region7: #{feed_forward.1} parent=1 // pred_check_branch
      %14 = sbr.rel (0) target = $region9
    $region8: #{feed_forward.1} parent=1 // pred_region
      _
    $region9: #{feed_forward.1} parent=1 // pred_fallthru
      _
    // Predicated region
    $region10: #{feed_forward.1} parent=1 // pred_check
      _
    $region11: #{feed_forward.1} parent=1 // pred_check_branch
      %16 = sbr.rel (0) target = $region13
    $region12: #{feed_forward.1} parent=1 // pred_region
      _
    $region13: #{feed_forward.1} parent=1 // pred_fallthru
      _
    // Predicated region
    $region14: #{feed_forward.1} parent=1 // pred_check
      _
    $region15: #{feed_forward.1} parent=1 // pred_check_branch
      %18 = sbr.rel (0) target = $region17
    $region16: #{feed_forward.1} parent=1 // pred_region
      _
    $region17: #{feed_forward.1} parent=1 // pred_fallthru
      _
    // Predicated region
    $region18: #{feed_forward.1} parent=1 // pred_check
      _
    $region19: #{feed_forward.1} parent=1 // pred_check_branch
      %20 = sbr.rel (0) target = $region21
    $region20: #{feed_forward.1} parent=1 // pred_region
      _
    $region21: #{feed_forward.1} parent=1 // pred_fallthru
      _
    %p21 = scmp.eq.s32.totalorder 0, 0
    // Predicated region
    $region22: #{feed_forward.1} parent=1 // pred_check
      %p22 = pneg %p21
    $region23: #{feed_forward.1} parent=1 // pred_check_branch
      %24 = sbr.rel (%p22) target = $region25
    $region24: #{feed_forward.1} parent=1 // pred_region
      %v25 = vld [vmem:[%s4] sm:$0x1]
      %v27 = vlaneseq
      %v28 = vshrl.u32 %v27, 7
      %v29 = vsub.s32 0, %v28
      %v30 = vrot.slane %v25, %v29
      %vm32 = vcmask 261120
      %33 = vst.msk [vmem:[#allocation2] sm:$0xff] %vm32, %v30
      %34 = vst.msk [vmem:[#allocation2 + $0x8] sm:$0xff] %vm32, %v30
    $region25: #{feed_forward.1} parent=1 // pred_fallthru
      _
    %v35 = vld [vmem:[%s0] sm:$0xff]
    %v36 = vld [vmem:[%s0 + $0x8] sm:$0xff]
    %v37 = vld [vmem:[%s1] sm:$0xff]
    %v38 = vld [vmem:[%s1 + $0x8] sm:$0xff]
    %v39 = vld [vmem:[%s1 + $0x10] sm:$0xff]
    %v40 = vld [vmem:[%s1 + $0x18] sm:$0xff]
    %v41 = vld [vmem:[%s2] sm:$0x1]
    %v43 = vlaneseq
    %v44 = vshrl.u32 %v43, 7
    %v45 = vsub.s32 0, %v44
    %v46 = vrot.slane %v41, %v45
    %vm48 = vcmask 261120
    %v50 = vsel %vm48, %v35, 0
    %v53 = vsel %vm48, %v36, 0
    %55 = vmatprep.subr.mxu0 0.0
    %56 = vmatpush1.msra.mxu0 %v37
    %57 = vmatprep.subr.mxu0 0.0
    %58 = vmatpush1.msra.mxu0 %v38
    %59 = vmatprep.subr.mxu0 0.0
    %60 = vmatpush1.msra.mxu0 %v39
    %61 = vmatprep.subr.mxu0 0.0
    %62 = vmatpush1.msra.mxu0 %v40
    %63 = vmatprep.subr.mxu0 0.0
    %64 = vmatpush1.msra.mxu0 0.0
    %65 = vmatprep.subr.mxu0 0.0
    %66 = vmatpush1.msra.mxu0 0.0
    %67 = vmatprep.subr.mxu0 0.0
    %68 = vmatpush1.msra.mxu0 0.0
    %69 = vmatprep.subr.mxu0 0.0
    %70 = vmatpush1.msra.mxu0 0.0
    %71 = vmatprep.subr.mxu0 0.0
    %72 = vmatpush1.msra.mxu0 0.0
    %73 = vmatprep.subr.mxu0 0.0
    %74 = vmatpush1.msra.mxu0 0.0
    %75 = vmatprep.subr.mxu0 0.0
    %76 = vmatpush1.msra.mxu0 0.0
    %77 = vmatprep.subr.mxu0 0.0
    %78 = vmatpush1.msra.mxu0 0.0
    %79 = vmatprep.subr.mxu0 0.0
    %80 = vmatpush1.msra.mxu0 0.0
    %81 = vmatprep.subr.mxu0 0.0
    %82 = vmatpush1.msra.mxu0 0.0
    %83 = vmatprep.subr.mxu0 0.0
    %84 = vmatpush1.msra.mxu0 0.0
    %85 = vmatprep.subr.mxu0 0.0
    %86 = vmatpush1.msra.mxu0 0.0
    %87 = vmatprep.subr.mxu0 0.0
    %88 = vmatpush1.msra.mxu0 0.0
    %89 = vmatprep.subr.mxu0 0.0
    %90 = vmatpush1.msra.mxu0 0.0
    %91 = vmatprep.subr.mxu0 0.0
    %92 = vmatpush1.msra.mxu0 0.0
    %93 = vmatprep.subr.mxu0 0.0
    %94 = vmatpush1.msra.mxu0 0.0
    %95 = vmatprep.subr.mxu0 0.0
    %96 = vmatpush1.msra.mxu0 0.0
    %97 = vmatprep.subr.mxu0 0.0
    %98 = vmatpush1.msra.mxu0 0.0
    %99 = vmatprep.subr.mxu0 0.0
    %100 = vmatpush1.msra.mxu0 0.0
    %101 = vmatprep.subr.mxu0 0.0
    %102 = vmatpush1.msra.mxu0 0.0
    %103 = vmatprep.subr.mxu0 0.0
    %104 = vmatpush1.msra.mxu0 0.0
    %105 = vmatprep.subr.mxu0 0.0
    %106 = vmatpush1.msra.mxu0 0.0
    %107 = vmatprep.subr.mxu0 0.0
    %108 = vmatpush1.msra.mxu0 0.0
    %109 = vmatprep.subr.mxu0 0.0
    %110 = vmatpush1.msra.mxu0 0.0
    %111 = vmatprep.subr.mxu0 0.0
    %112 = vmatpush1.msra.mxu0 0.0
    %113 = vmatprep.subr.mxu0 0.0
    %114 = vmatpush1.msra.mxu0 0.0
    %115 = vmatprep.subr.mxu0 0.0
    %116 = vmatpush1.msra.mxu0 0.0
    %117 = vmatprep.subr.mxu0 0.0
    %118 = vmatpush1.msra.mxu0 0.0
    %119 = vmatprep.mubr.f32.mxu0 0.0
    %120 = vmatmul.mubr.f32.gmra.mrb[0].mxu0 %v50
    %v121 = vpop.f32.mrb[0].mxu0
    %v122 = vadd.f32 %v46, %v121
    %v123 = vpop.f32.mrb[0].mxu0
    %124 = vmatprep.mubr.f32.mxu0 0.0
    %125 = vmatmul.mubr.f32.gmra.mrb[0].mxu0 %v53
    %v126 = vpop.f32.mrb[0].mxu0
    %v127 = vadd.f32 %v46, %v126
    %v128 = vpop.f32.mrb[0].mxu0
    %129 = vdwg.mxu0
    %v130 = vmax.f32 %v122, 0.0
    %v131 = vmax.f32 %v127, 0.0
    %v132 = vld [vmem:[#allocation2] sm:$0xff]
    %v133 = vld [vmem:[#allocation2 + $0x8] sm:$0xff]
    %v134 = vld [vmem:[%s3] sm:$0xff]
    %v135 = vld [vmem:[%s3 + $0x8] sm:$0xff]
    %v136 = vld [vmem:[%s3 + $0x10] sm:$0xff]
    %v137 = vld [vmem:[%s3 + $0x18] sm:$0xff]
    %v138 = vld [vmem:[%s3 + $0x20] sm:$0xff]
    %v139 = vld [vmem:[%s3 + $0x28] sm:$0xff]
    %v140 = vld [vmem:[%s3 + $0x30] sm:$0xff]
    %v141 = vld [vmem:[%s3 + $0x38] sm:$0xff]
    %vm142 = vcmask 523264
    %v144 = vsel %vm142, %v130, 0
    %v147 = vsel %vm142, %v131, 0
    %149 = vmatprep.subr.mxu0 0.0
    %150 = vmatpush1.msra.mxu0 %v134
    %151 = vmatprep.subr.mxu0 0.0
    %152 = vmatpush1.msra.mxu0 %v135
    %153 = vmatprep.subr.mxu0 0.0
    %154 = vmatpush1.msra.mxu0 %v136
    %155 = vmatprep.subr.mxu0 0.0
    %156 = vmatpush1.msra.mxu0 %v137
    %157 = vmatprep.subr.mxu0 0.0
    %158 = vmatpush1.msra.mxu0 %v138
    %159 = vmatprep.subr.mxu0 0.0
    %160 = vmatpush1.msra.mxu0 %v139
    %161 = vmatprep.subr.mxu0 0.0
    %162 = vmatpush1.msra.mxu0 %v140
    %163 = vmatprep.subr.mxu0 0.0
    %164 = vmatpush1.msra.mxu0 %v141
    %165 = vmatprep.subr.mxu0 0.0
    %166 = vmatpush1.msra.mxu0 0.0
    %167 = vmatprep.subr.mxu0 0.0
    %168 = vmatpush1.msra.mxu0 0.0
    %169 = vmatprep.subr.mxu0 0.0
    %170 = vmatpush1.msra.mxu0 0.0
    %171 = vmatprep.subr.mxu0 0.0
    %172 = vmatpush1.msra.mxu0 0.0
    %173 = vmatprep.subr.mxu0 0.0
    %174 = vmatpush1.msra.mxu0 0.0
    %175 = vmatprep.subr.mxu0 0.0
    %176 = vmatpush1.msra.mxu0 0.0
    %177 = vmatprep.subr.mxu0 0.0
    %178 = vmatpush1.msra.mxu0 0.0
    %179 = vmatprep.subr.mxu0 0.0
    %180 = vmatpush1.msra.mxu0 0.0
    %181 = vmatprep.subr.mxu0 0.0
    %182 = vmatpush1.msra.mxu0 0.0
    %183 = vmatprep.subr.mxu0 0.0
    %184 = vmatpush1.msra.mxu0 0.0
    %185 = vmatprep.subr.mxu0 0.0
    %186 = vmatpush1.msra.mxu0 0.0
    %187 = vmatprep.subr.mxu0 0.0
    %188 = vmatpush1.msra.mxu0 0.0
    %189 = vmatprep.subr.mxu0 0.0
    %190 = vmatpush1.msra.mxu0 0.0
    %191 = vmatprep.subr.mxu0 0.0
    %192 = vmatpush1.msra.mxu0 0.0
    %193 = vmatprep.subr.mxu0 0.0
    %194 = vmatpush1.msra.mxu0 0.0
    %195 = vmatprep.subr.mxu0 0.0
    %196 = vmatpush1.msra.mxu0 0.0
    %197 = vmatprep.subr.mxu0 0.0
    %198 = vmatpush1.msra.mxu0 0.0
    %199 = vmatprep.subr.mxu0 0.0
    %200 = vmatpush1.msra.mxu0 0.0
    %201 = vmatprep.subr.mxu0 0.0
    %202 = vmatpush1.msra.mxu0 0.0
    %203 = vmatprep.subr.mxu0 0.0
    %204 = vmatpush1.msra.mxu0 0.0
    %205 = vmatprep.subr.mxu0 0.0
    %206 = vmatpush1.msra.mxu0 0.0
    %207 = vmatprep.subr.mxu0 0.0
    %208 = vmatpush1.msra.mxu0 0.0
    %209 = vmatprep.subr.mxu0 0.0
    %210 = vmatpush1.msra.mxu0 0.0
    %211 = vmatprep.subr.mxu0 0.0
    %212 = vmatpush1.msra.mxu0 0.0
    %213 = vmatprep.mubr.f32.mxu0 0.0
    %214 = vmatmul.mubr.f32.gmra.mrb[0].mxu0 %v144
    %v215 = vpop.f32.mrb[0].mxu0
    %v216 = vadd.f32 0.0, %v215
    %v217 = vpop.f32.mrb[0].mxu0
    %218 = vmatprep.mubr.f32.mxu0 0.0
    %219 = vmatmul.mubr.f32.gmra.mrb[0].mxu0 %v147
    %v220 = vpop.f32.mrb[0].mxu0
    %v221 = vadd.f32 0.0, %v220
    %v222 = vpop.f32.mrb[0].mxu0
    %223 = vdwg.mxu0
    %v224 = vadd.f32 %v132, %v216
    %v225 = vadd.f32 %v133, %v221
    %226 = vst.msk [vmem:[#allocation2] sm:$0xff] %vm48, %v224
    %227 = vst.msk [vmem:[#allocation2 + $0x8] sm:$0xff] %vm48, %v225
    // Predicated region
    $region26: #{feed_forward.1} parent=1 // pred_check
      %p228 = pneg %p21
    $region27: #{feed_forward.1} parent=1 // pred_check_branch
      %230 = sbr.rel (%p228) target = $region29
    $region28: #{feed_forward.1} parent=1 // pred_region
      %v231 = vld [vmem:[#allocation2] sm:$0xff]
      %v232 = vld [vmem:[#allocation2 + $0x8] sm:$0xff]
      %233 = vst.msk [vmem:[#allocation3] sm:$0xff] %vm48, %v231
      %234 = vst.msk [vmem:[#allocation3 + $0x8] sm:$0xff] %vm48, %v232
    $region29: #{feed_forward.1} parent=1 // pred_fallthru
      _
    // Predicated region
    $region30: #{feed_forward.1} parent=1 // pred_check
      _
    $region31: #{feed_forward.1} parent=1 // pred_check_branch
      %236 = sbr.rel (0) target = $region33
    $region32: #{feed_forward.1} parent=1 // pred_region
      %s238 = ssub.s32 256, 256
      %239 = vsyncadd [#allocation4], %s238
      %s240 = sshll.u32 [#allocation3], 4
      %s241 = int_to_ptr.vmem [resolvable:$true] %s240
      %246 = dma.vmem_to_hbm [thread:$0]  %s241, 256, %s5, [#allocation4], 128, 128, 8
    $region33: #{feed_forward.1} parent=1 // pred_fallthru
      _
    // Predicated region
    $region34: #{feed_forward.1} parent=1 // pred_check
      _
    $region35: #{feed_forward.1} parent=1 // pred_check_branch
      %248 = sbr.rel (0) target = $region37
    $region36: #{feed_forward.1} parent=1 // pred_region
      %249 = dma.done [#allocation4], 256
    $region37: #{feed_forward.1} parent=1 // pred_fallthru
      _
    %250 = vsyncpa [#allocation4], 1

</llo_original>
